<compile_context>
chip_gen: v6e
topology: v6e:2x2x1
jax: 0.10.0
libtpu: 0.0.40
codegen_flags: <defaults>
</compile_context>

<pallas_src>
import jax
import jax.numpy as jnp
from jax.experimental import pallas as pl
from jax.experimental.pallas import tpu as pltpu

DILATION = 2
BN_EPS = 1e-5


def _bn_fold(h, gamma, beta, m_total, m_pad, eps):
    """Training-mode BatchNorm1d folded into per-channel (scale, shift).

    h: (C, m_pad) f32 whose pad lanes (m >= m_total) are exactly zero.
    Mean-subtracted two-pass variance with an exact correction for the zero
    pad lanes (each contributes mean^2 to the centered sum of squares).
    """
    inv_m = 1.0 / m_total
    mean = jnp.sum(h, axis=1, keepdims=True) * inv_m               # (C, 1)
    centered = h - mean
    ss = jnp.sum(centered * centered, axis=1, keepdims=True)       # (C, 1)
    var = (ss - (m_pad - m_total) * (mean * mean)) * inv_m         # biased var
    var = jnp.maximum(var, 0.0)
    scale = gamma * jax.lax.rsqrt(var + eps)                       # (C, 1)
    shift = beta - mean * scale
    return scale, shift


def _make_kernel(*, cin, lout, m_total, m_pad, d, stride, eps,
                 has_projection, fused_conv1, compute_dtype):
    def kernel(*refs):
        if has_projection:
            x_ref, pos_ref, w1_ref, w2_ref, bn_ref, wsc_ref, o_ref = refs
        else:
            x_ref, pos_ref, w1_ref, w2_ref, bn_ref, o_ref = refs

        pos = pos_ref[...]            # (1, m_pad) int32; pad lanes = -2^20 sentinel
        bnp = bn_ref[...]             # (planes, 6) f32

        def tap_of(src, sh):
            # tap[c, m] = src[c, m + sh] if (j + sh) in [0, lout) and m < M else 0.
            # Roll wrap-around + lane padding are both killed by the mask
            # (pad lanes have a large-negative position sentinel).
            rolled = src if sh == 0 else pltpu.roll(src, shift=(-sh) % m_pad, axis=1)
            valid = jnp.logical_and(pos + sh >= 0, pos + sh < lout)
            return jnp.where(valid, rolled, jnp.zeros_like(rolled))

        # ---------------- conv1 -> BN1 -> ReLU ----------------
        if fused_conv1:
            xs = x_ref[...]                                   # (cin, m_pad)
            sh1 = d // stride                                 # tap shift on strided grid
            h = None
            for k, sh in enumerate((-sh1, 0, sh1)):
                t = jnp.dot(w1_ref[k], tap_of(xs, sh),
                            preferred_element_type=jnp.float32)
                h = t if h is None else h + t
        else:
            xp = x_ref[...]                                   # (3*cin, m_pad)
            xs = xp[0:cin, :]                                 # centre tap == strided x
            h = jnp.dot(w1_ref[...], xp, preferred_element_type=jnp.float32)

        s1, t1 = _bn_fold(h, bnp[:, 0:1], bnp[:, 1:2], m_total, m_pad, eps)
        a1 = jnp.maximum(h * s1 + t1, 0.0).astype(compute_dtype)

        # ---------------- conv2 (k=3, stride 1, dilation d) -> BN2 ----------------
        out2 = None
        for k, sh in enumerate((-d, 0, d)):
            t = jnp.dot(w2_ref[k], tap_of(a1, sh),
                        preferred_element_type=jnp.float32)
            out2 = t if out2 is None else out2 + t
        s2, t2 = _bn_fold(out2, bnp[:, 2:3], bnp[:, 3:4], m_total, m_pad, eps)
        out2 = out2 * s2 + t2

        # ---------------- shortcut ----------------
        if has_projection:
            sc = jnp.dot(wsc_ref[...], xs, preferred_element_type=jnp.float32)
            ssc, tsc = _bn_fold(sc, bnp[:, 4:5], bnp[:, 5:6], m_total, m_pad, eps)
            sc = sc * ssc + tsc
        else:
            sc = xs.astype(jnp.float32)

        o_ref[...] = jnp.maximum(out2 + sc, 0.0).astype(o_ref.dtype)

    return kernel


def basic_block_forward(x, params, *, stride=1, dilation=DILATION, eps=BN_EPS,
                        matmul_dtype=jnp.bfloat16):
    """BasicBlock forward.  x: (N, Cin, L) f32 -> (N, planes, Lout) f32."""
    n, cin, length = x.shape
    w1 = params["w1"]
    planes = int(w1.shape[0])
    d = int(dilation)
    stride = int(stride)
    lout = (length - 1) // stride + 1
    m_total = n * lout
    m_pad = ((m_total + 127) // 128) * 128          # lane-dense width (multiple of 128)
    has_projection = (stride != 1) or (cin != planes)
    fused_conv1 = (d % stride == 0)                 # in-kernel conv1 taps valid
    cdt = matmul_dtype

    def _pad_lanes(a2d):
        return jnp.pad(a2d, ((0, 0), (0, m_pad - m_total)))

    # Strided input slab (Cin, M): conv1 centre tap == identity / 1x1 shortcut input.
    xs = jnp.transpose(x[:, :, ::stride][:, :, :lout], (1, 0, 2)).reshape(cin, m_total)

    if fused_conv1:
        x_in = _pad_lanes(xs).astype(cdt)                            # (cin, m_pad)
        w1_in = jnp.transpose(w1, (2, 0, 1)).astype(cdt)             # (3, planes, cin)
    else:
        # General stride fallback: prebuild the 3 dilated conv1 taps wrapper-side
        # (centre tap first so the shortcut reads rows [0:cin] of the same slab).
        xpad = jnp.pad(x, ((0, 0), (0, 0), (d, d)))
        taps = [jnp.transpose(
                    xpad[:, :, k * d: k * d + stride * (lout - 1) + 1: stride],
                    (1, 0, 2)).reshape(cin, m_total)
                for k in (1, 0, 2)]
        x_in = _pad_lanes(jnp.concatenate(taps, axis=0)).astype(cdt)  # (3cin, m_pad)
        w1_in = jnp.concatenate([w1[:, :, 1], w1[:, :, 0], w1[:, :, 2]],
                                axis=1).astype(cdt)                   # (planes, 3cin)

    w2_in = jnp.transpose(params["w2"], (2, 0, 1)).astype(cdt)        # (3, planes, planes)

    ones = jnp.ones((planes,), jnp.float32)
    zeros = jnp.zeros((planes,), jnp.float32)
    bn_in = jnp.stack(
        [params["g1"].astype(jnp.float32), params["b1"].astype(jnp.float32),
         params["g2"].astype(jnp.float32), params["b2"].astype(jnp.float32),
         params.get("gsc", ones).astype(jnp.float32),
         params.get("bsc", zeros).astype(jnp.float32)], axis=1)       # (planes, 6)

    # Per-lane position j = m % Lout, precomputed wrapper-side; pad lanes get a
    # large-negative sentinel so every tap mask rejects them.
    pos_in = jnp.concatenate(
        [jnp.tile(jnp.arange(lout, dtype=jnp.int32), n),
         jnp.full((m_pad - m_total,), -(1 << 20), dtype=jnp.int32)]).reshape(1, m_pad)

    inputs = [x_in, pos_in, w1_in, w2_in, bn_in]
    if has_projection:
        inputs.append(params["wsc"].reshape(planes, cin).astype(cdt))

    kernel = _make_kernel(cin=cin, lout=lout, m_total=m_total, m_pad=m_pad, d=d,
                          stride=stride, eps=eps, has_projection=has_projection,
                          fused_conv1=fused_conv1, compute_dtype=cdt)

    def _full(a):
        nd = a.ndim
        return pl.BlockSpec(a.shape, lambda i, _nd=nd: (0,) * _nd)

    # VMEM budget: double-buffered inputs/output + ~a dozen (planes, m_pad) f32
    # intermediates; clamped to [16 MiB, 64 MiB] so it is valid on v5e/v6e/v7x.
    slab = planes * m_pad * 4
    vmem_limit = 2 * (sum(int(a.size) * a.dtype.itemsize for a in inputs) + slab) \
        + 12 * slab + (2 << 20)
    vmem_limit = max(16 << 20, min(64 << 20, int(vmem_limit)))

    out2d = pl.pallas_call(
        kernel,
        out_shape=jax.ShapeDtypeStruct((planes, m_pad), jnp.float32),
        grid=(1,),
        in_specs=[_full(a) for a in inputs],
        out_specs=pl.BlockSpec((planes, m_pad), lambda i: (0, 0)),
        compiler_params=pltpu.CompilerParams(
            dimension_semantics=("arbitrary",),
            vmem_limit_bytes=vmem_limit),
    )(*inputs)

    # Lane-dense kernel output -> PyTorch (N, planes, Lout) layout (wrapper-side).
    return jnp.transpose(out2d[:, :m_total].reshape(planes, n, lout), (1, 0, 2))


# ----------------------------- pure-JAX reference -----------------------------
def _ref_conv1d(x, w, stride, padding, dilation):
    return jax.lax.conv_general_dilated(
        x, w, window_strides=(stride,), padding=[(padding, padding)],
        rhs_dilation=(dilation,), dimension_numbers=("NCH", "OIH", "NCH"))


def _ref_bn(h, gamma, beta, eps=BN_EPS):
    mean = jnp.mean(h, axis=(0, 2), keepdims=True)
    var = jnp.mean((h - mean) ** 2, axis=(0, 2), keepdims=True)
    return ((h - mean) / jnp.sqrt(var + eps)) * gamma.reshape(1, -1, 1) \
        + beta.reshape(1, -1, 1)


def _ref_basic_block(x, params, *, stride, dilation, eps=BN_EPS):
    d = dilation
    h = jax.nn.relu(_ref_bn(_ref_conv1d(x, params["w1"], stride, d, d),
                            params["g1"], params["b1"], eps))
    out = _ref_bn(_ref_conv1d(h, params["w2"], 1, d, d),
                  params["g2"], params["b2"], eps)
    cin, planes = x.shape[1], params["w1"].shape[0]
    if stride != 1 or cin != planes:
        sc = _ref_bn(_ref_conv1d(x, params["wsc"], stride, 0, 1),
                     params["gsc"], params["bsc"], eps)
    else:
        sc = x
    return jax.nn.relu(out + sc)


if __name__ == "__main__":
    key = jax.random.PRNGKey(0)
    k = jax.random.split(key, 10)

    # --- config 1: projection shortcut (stride=2, in_planes != planes), fused taps
    n, cin, planes, length, stride = 2, 4, 8, 16, 2
    x = jax.random.normal(k[0], (n, cin, length), jnp.float32)
    params = dict(
        w1=0.3 * jax.random.normal(k[1], (planes, cin, 3), jnp.float32),
        g1=jnp.ones((planes,), jnp.float32), b1=jnp.zeros((planes,), jnp.float32),
        w2=0.2 * jax.random.normal(k[2], (planes, planes, 3), jnp.float32),
        g2=jnp.ones((planes,), jnp.float32), b2=jnp.zeros((planes,), jnp.float32),
        wsc=0.3 * jax.random.normal(k[3], (planes, cin, 1), jnp.float32),
        gsc=jnp.ones((planes,), jnp.float32), bsc=jnp.zeros((planes,), jnp.float32),
    )
    ref = _ref_basic_block(x, params, stride=stride, dilation=DILATION)

    out = jax.block_until_ready(basic_block_forward(
        x, params, stride=stride, dilation=DILATION, matmul_dtype=jnp.float32))
    assert out.shape == (n, planes, (length - 1) // stride + 1)
    assert jnp.allclose(out, ref, atol=1e-4, rtol=1e-4), \
        float(jnp.max(jnp.abs(out - ref)))

    # same config with bf16 MXU operands (production default); BN stays f32.
    out_bf = jax.block_until_ready(basic_block_forward(
        x, params, stride=stride, dilation=DILATION, matmul_dtype=jnp.bfloat16))
    assert jnp.allclose(out_bf, ref, atol=1e-1, rtol=5e-2), \
        float(jnp.max(jnp.abs(out_bf - ref)))

    # --- config 2: identity shortcut (stride=1, in_planes == planes), fused taps
    n2, c2, length2 = 2, 8, 16
    x2 = jax.random.normal(k[4], (n2, c2, length2), jnp.float32)
    params2 = dict(
        w1=0.2 * jax.random.normal(k[5], (c2, c2, 3), jnp.float32),
        g1=jnp.ones((c2,), jnp.float32), b1=jnp.zeros((c2,), jnp.float32),
        w2=0.2 * jax.random.normal(k[6], (c2, c2, 3), jnp.float32),
        g2=jnp.ones((c2,), jnp.float32), b2=jnp.zeros((c2,), jnp.float32),
    )
    out2 = jax.block_until_ready(basic_block_forward(
        x2, params2, stride=1, dilation=DILATION, matmul_dtype=jnp.float32))
    ref2 = _ref_basic_block(x2, params2, stride=1, dilation=DILATION)
    assert out2.shape == (n2, c2, length2)
    assert jnp.allclose(out2, ref2, atol=1e-4, rtol=1e-4), \
        float(jnp.max(jnp.abs(out2 - ref2)))

    # --- config 3: stride=3 (dilation % stride != 0) -> wrapper-built conv1 taps
    n3, cin3, planes3, length3, stride3 = 2, 4, 8, 16, 3
    x3 = jax.random.normal(k[7], (n3, cin3, length3), jnp.float32)
    params3 = dict(
        w1=0.3 * jax.random.normal(k[8], (planes3, cin3, 3), jnp.float32),
        g1=jnp.ones((planes3,), jnp.float32), b1=jnp.zeros((planes3,), jnp.float32),
        w2=0.2 * jax.random.normal(k[9], (planes3, planes3, 3), jnp.float32),
        g2=jnp.ones((planes3,), jnp.float32), b2=jnp.zeros((planes3,), jnp.float32),
        wsc=0.3 * jax.random.normal(k[3], (planes3, cin3, 1), jnp.float32),
        gsc=jnp.ones((planes3,), jnp.float32), bsc=jnp.zeros((planes3,), jnp.float32),
    )
    out3 = jax.block_until_ready(basic_block_forward(
        x3, params3, stride=stride3, dilation=DILATION, matmul_dtype=jnp.float32))
    ref3 = _ref_basic_block(x3, params3, stride=stride3, dilation=DILATION)
    assert out3.shape == (n3, planes3, (length3 - 1) // stride3 + 1)
    assert jnp.allclose(out3, ref3, atol=1e-4, rtol=1e-4), \
        float(jnp.max(jnp.abs(out3 - ref3)))

    print("KERNEL_OK")
</pallas_src>

<mosaic_0001>
module attributes {stable_mosaic.version = 11 : i64} {
  func.func @kernel(%arg0: i32, %arg1: memref<4x128xf32, #tpu.memory_space<vmem>>, %arg2: memref<1x128xi32, #tpu.memory_space<vmem>>, %arg3: memref<3x8x4xf32, #tpu.memory_space<vmem>>, %arg4: memref<3x8x8xf32, #tpu.memory_space<vmem>>, %arg5: memref<8x6xf32, #tpu.memory_space<vmem>>, %arg6: memref<8x4xf32, #tpu.memory_space<vmem>>, %arg7: memref<8x128xf32, #tpu.memory_space<vmem>>) attributes {dimension_semantics = [#tpu.dimension_semantics<arbitrary>], iteration_bounds = array<i64: 1>, scalar_prefetch = 0 : i64, scratch_operands = 0 : i64, tpu.core_type = #tpu.core_type<tc>, window_params = [{pipeline_mode = #tpu.pipeline_mode<synchronous>, transform_indices = @transform_0, window_bounds = array<i64: 4, 128>}, {pipeline_mode = #tpu.pipeline_mode<synchronous>, transform_indices = @transform_1, window_bounds = array<i64: 1, 128>}, {pipeline_mode = #tpu.pipeline_mode<synchronous>, transform_indices = @transform_2, window_bounds = array<i64: 3, 8, 4>}, {pipeline_mode = #tpu.pipeline_mode<synchronous>, transform_indices = @transform_3, window_bounds = array<i64: 3, 8, 8>}, {pipeline_mode = #tpu.pipeline_mode<synchronous>, transform_indices = @transform_4, window_bounds = array<i64: 8, 6>}, {pipeline_mode = #tpu.pipeline_mode<synchronous>, transform_indices = @transform_5, window_bounds = array<i64: 8, 4>}, {pipeline_mode = #tpu.pipeline_mode<synchronous>, transform_indices = @transform_6, window_bounds = array<i64: 8, 128>}]} {
    %c0 = arith.constant 0 : index
    %c0_0 = arith.constant 0 : index
    %0 = vector.load %arg2[%c0, %c0_0] : memref<1x128xi32, #tpu.memory_space<vmem>>, vector<1x128xi32>
    %c0_1 = arith.constant 0 : index
    %c0_2 = arith.constant 0 : index
    %1 = vector.load %arg5[%c0_1, %c0_2] : memref<8x6xf32, #tpu.memory_space<vmem>>, vector<8x6xf32>
    %c0_3 = arith.constant 0 : index
    %c0_4 = arith.constant 0 : index
    %2 = vector.load %arg1[%c0_3, %c0_4] : memref<4x128xf32, #tpu.memory_space<vmem>>, vector<4x128xf32>
    %c0_5 = arith.constant 0 : index
    %c0_6 = arith.constant 0 : index
    %c0_7 = arith.constant 0 : index
    %3 = vector.load %arg3[%c0_5, %c0_6, %c0_7] : memref<3x8x4xf32, #tpu.memory_space<vmem>>, vector<1x8x4xf32>
    %4 = vector.shape_cast %3 : vector<1x8x4xf32> to vector<8x4xf32>
    %c1_i32 = arith.constant 1 : i32
    %5 = tpu.dynamic_rotate %2 by %c1_i32 dim 1 : vector<4x128xf32>, i32 -> vector<4x128xf32>
    %c-1_i32 = arith.constant -1 : i32
    %6 = vector.broadcast %c-1_i32 : i32 to vector<1x128xi32>
    %7 = arith.addi %0, %6 : vector<1x128xi32>
    %c0_i32 = arith.constant 0 : i32
    %8 = vector.broadcast %c0_i32 : i32 to vector<1x128xi32>
    %9 = arith.cmpi sge, %7, %8 : vector<1x128xi32>
    %c-1_i32_8 = arith.constant -1 : i32
    %10 = vector.broadcast %c-1_i32_8 : i32 to vector<1x128xi32>
    %11 = arith.addi %0, %10 : vector<1x128xi32>
    %c8_i32 = arith.constant 8 : i32
    %12 = vector.broadcast %c8_i32 : i32 to vector<1x128xi32>
    %13 = arith.cmpi slt, %11, %12 : vector<1x128xi32>
    %14 = arith.andi %9, %13 : vector<1x128xi1>
    %cst = arith.constant 0.000000e+00 : f32
    %15 = vector.broadcast %cst : f32 to vector<4x128xf32>
    %16 = vector.shape_cast %14 : vector<1x128xi1> to vector<1x128xi1>
    %17 = vector.broadcast %16 : vector<1x128xi1> to vector<4x128xi1>
    %18 = arith.select %17, %5, %15 : vector<4x128xi1>, vector<4x128xf32>
    %cst_9 = arith.constant dense<0.000000e+00> : vector<8x128xf32>
    %19 = tpu.matmul %4, %18, %cst_9 {dimension_numbers = #tpu.dot_dimension_numbers<[1], [0], [0], [1], [0, 0, 1, 1], [], []>} : vector<8x4xf32>, vector<4x128xf32>, vector<8x128xf32> -> vector<8x128xf32>
    %c1 = arith.constant 1 : index
    %c0_10 = arith.constant 0 : index
    %c0_11 = arith.constant 0 : index
    %20 = vector.load %arg3[%c1, %c0_10, %c0_11] : memref<3x8x4xf32, #tpu.memory_space<vmem>>, vector<1x8x4xf32>
    %21 = vector.shape_cast %20 : vector<1x8x4xf32> to vector<8x4xf32>
    %c0_i32_12 = arith.constant 0 : i32
    %22 = vector.broadcast %c0_i32_12 : i32 to vector<1x128xi32>
    %23 = arith.addi %0, %22 : vector<1x128xi32>
    %c0_i32_13 = arith.constant 0 : i32
    %24 = vector.broadcast %c0_i32_13 : i32 to vector<1x128xi32>
    %25 = arith.cmpi sge, %23, %24 : vector<1x128xi32>
    %c0_i32_14 = arith.constant 0 : i32
    %26 = vector.broadcast %c0_i32_14 : i32 to vector<1x128xi32>
    %27 = arith.addi %0, %26 : vector<1x128xi32>
    %c8_i32_15 = arith.constant 8 : i32
    %28 = vector.broadcast %c8_i32_15 : i32 to vector<1x128xi32>
    %29 = arith.cmpi slt, %27, %28 : vector<1x128xi32>
    %30 = arith.andi %25, %29 : vector<1x128xi1>
    %cst_16 = arith.constant 0.000000e+00 : f32
    %31 = vector.broadcast %cst_16 : f32 to vector<4x128xf32>
    %32 = vector.shape_cast %30 : vector<1x128xi1> to vector<1x128xi1>
    %33 = vector.broadcast %32 : vector<1x128xi1> to vector<4x128xi1>
    %34 = arith.select %33, %2, %31 : vector<4x128xi1>, vector<4x128xf32>
    %cst_17 = arith.constant dense<0.000000e+00> : vector<8x128xf32>
    %35 = tpu.matmul %21, %34, %cst_17 {dimension_numbers = #tpu.dot_dimension_numbers<[1], [0], [0], [1], [0, 0, 1, 1], [], []>} : vector<8x4xf32>, vector<4x128xf32>, vector<8x128xf32> -> vector<8x128xf32>
    %36 = arith.addf %19, %35 : vector<8x128xf32>
    %c2 = arith.constant 2 : index
    %c0_18 = arith.constant 0 : index
    %c0_19 = arith.constant 0 : index
    %37 = vector.load %arg3[%c2, %c0_18, %c0_19] : memref<3x8x4xf32, #tpu.memory_space<vmem>>, vector<1x8x4xf32>
    %38 = vector.shape_cast %37 : vector<1x8x4xf32> to vector<8x4xf32>
    %c127_i32 = arith.constant 127 : i32
    %39 = tpu.dynamic_rotate %2 by %c127_i32 dim 1 : vector<4x128xf32>, i32 -> vector<4x128xf32>
    %c1_i32_20 = arith.constant 1 : i32
    %40 = vector.broadcast %c1_i32_20 : i32 to vector<1x128xi32>
    %41 = arith.addi %0, %40 : vector<1x128xi32>
    %c0_i32_21 = arith.constant 0 : i32
    %42 = vector.broadcast %c0_i32_21 : i32 to vector<1x128xi32>
    %43 = arith.cmpi sge, %41, %42 : vector<1x128xi32>
    %c1_i32_22 = arith.constant 1 : i32
    %44 = vector.broadcast %c1_i32_22 : i32 to vector<1x128xi32>
    %45 = arith.addi %0, %44 : vector<1x128xi32>
    %c8_i32_23 = arith.constant 8 : i32
    %46 = vector.broadcast %c8_i32_23 : i32 to vector<1x128xi32>
    %47 = arith.cmpi slt, %45, %46 : vector<1x128xi32>
    %48 = arith.andi %43, %47 : vector<1x128xi1>
    %cst_24 = arith.constant 0.000000e+00 : f32
    %49 = vector.broadcast %cst_24 : f32 to vector<4x128xf32>
    %50 = vector.shape_cast %48 : vector<1x128xi1> to vector<1x128xi1>
    %51 = vector.broadcast %50 : vector<1x128xi1> to vector<4x128xi1>
    %52 = arith.select %51, %39, %49 : vector<4x128xi1>, vector<4x128xf32>
    %cst_25 = arith.constant dense<0.000000e+00> : vector<8x128xf32>
    %53 = tpu.matmul %38, %52, %cst_25 {dimension_numbers = #tpu.dot_dimension_numbers<[1], [0], [0], [1], [0, 0, 1, 1], [], []>} : vector<8x4xf32>, vector<4x128xf32>, vector<8x128xf32> -> vector<8x128xf32>
    %54 = arith.addf %36, %53 : vector<8x128xf32>
    %55 = vector.extract_strided_slice %1 {offsets = [0, 0], sizes = [8, 1], strides = [1, 1]} : vector<8x6xf32> to vector<8x1xf32>
    %56 = vector.extract_strided_slice %1 {offsets = [0, 1], sizes = [8, 1], strides = [1, 1]} : vector<8x6xf32> to vector<8x1xf32>
    %cst_26 = arith.constant dense<0.000000e+00> : vector<8xf32>
    %57 = vector.multi_reduction <add>, %54, %cst_26 [1] : vector<8x128xf32> to vector<8xf32>
    %58 = vector.shape_cast %57 : vector<8xf32> to vector<8x1xf32>
    %cst_27 = arith.constant 6.250000e-02 : f32
    %59 = vector.broadcast %cst_27 : f32 to vector<8x1xf32>
    %60 = arith.mulf %58, %59 : vector<8x1xf32>
    %61 = vector.broadcast %60 : vector<8x1xf32> to vector<8x128xf32>
    %62 = arith.subf %54, %61 : vector<8x128xf32>
    %63 = arith.mulf %62, %62 : vector<8x128xf32>
    %cst_28 = arith.constant dense<0.000000e+00> : vector<8xf32>
    %64 = vector.multi_reduction <add>, %63, %cst_28 [1] : vector<8x128xf32> to vector<8xf32>
    %65 = vector.shape_cast %64 : vector<8xf32> to vector<8x1xf32>
    %66 = arith.mulf %60, %60 : vector<8x1xf32>
    %cst_29 = arith.constant 1.120000e+02 : f32
    %67 = vector.broadcast %cst_29 : f32 to vector<8x1xf32>
    %68 = arith.mulf %67, %66 : vector<8x1xf32>
    %69 = arith.subf %65, %68 : vector<8x1xf32>
    %cst_30 = arith.constant 6.250000e-02 : f32
    %70 = vector.broadcast %cst_30 : f32 to vector<8x1xf32>
    %71 = arith.mulf %69, %70 : vector<8x1xf32>
    %cst_31 = arith.constant 0.000000e+00 : f32
    %72 = vector.broadcast %cst_31 : f32 to vector<8x1xf32>
    %73 = arith.maximumf %71, %72 : vector<8x1xf32>
    %cst_32 = arith.constant 9.99999974E-6 : f32
    %74 = vector.broadcast %cst_32 : f32 to vector<8x1xf32>
    %75 = arith.addf %73, %74 : vector<8x1xf32>
    %76 = math.rsqrt %75 : vector<8x1xf32>
    %77 = arith.mulf %55, %76 : vector<8x1xf32>
    %78 = arith.mulf %60, %77 : vector<8x1xf32>
    %79 = arith.subf %56, %78 : vector<8x1xf32>
    %80 = vector.broadcast %77 : vector<8x1xf32> to vector<8x128xf32>
    %81 = arith.mulf %54, %80 : vector<8x128xf32>
    %82 = vector.broadcast %79 : vector<8x1xf32> to vector<8x128xf32>
    %83 = arith.addf %81, %82 : vector<8x128xf32>
    %cst_33 = arith.constant 0.000000e+00 : f32
    %84 = vector.broadcast %cst_33 : f32 to vector<8x128xf32>
    %85 = arith.maximumf %83, %84 : vector<8x128xf32>
    %c0_34 = arith.constant 0 : index
    %c0_35 = arith.constant 0 : index
    %c0_36 = arith.constant 0 : index
    %86 = vector.load %arg4[%c0_34, %c0_35, %c0_36] : memref<3x8x8xf32, #tpu.memory_space<vmem>>, vector<1x8x8xf32>
    %87 = vector.shape_cast %86 : vector<1x8x8xf32> to vector<8x8xf32>
    %c2_i32 = arith.constant 2 : i32
    %88 = tpu.dynamic_rotate %85 by %c2_i32 dim 1 : vector<8x128xf32>, i32 -> vector<8x128xf32>
    %c-2_i32 = arith.constant -2 : i32
    %89 = vector.broadcast %c-2_i32 : i32 to vector<1x128xi32>
    %90 = arith.addi %0, %89 : vector<1x128xi32>
    %c0_i32_37 = arith.constant 0 : i32
    %91 = vector.broadcast %c0_i32_37 : i32 to vector<1x128xi32>
    %92 = arith.cmpi sge, %90, %91 : vector<1x128xi32>
    %c-2_i32_38 = arith.constant -2 : i32
    %93 = vector.broadcast %c-2_i32_38 : i32 to vector<1x128xi32>
    %94 = arith.addi %0, %93 : vector<1x128xi32>
    %c8_i32_39 = arith.constant 8 : i32
    %95 = vector.broadcast %c8_i32_39 : i32 to vector<1x128xi32>
    %96 = arith.cmpi slt, %94, %95 : vector<1x128xi32>
    %97 = arith.andi %92, %96 : vector<1x128xi1>
    %cst_40 = arith.constant 0.000000e+00 : f32
    %98 = vector.broadcast %cst_40 : f32 to vector<8x128xf32>
    %99 = vector.shape_cast %97 : vector<1x128xi1> to vector<1x128xi1>
    %100 = vector.broadcast %99 : vector<1x128xi1> to vector<8x128xi1>
    %101 = arith.select %100, %88, %98 : vector<8x128xi1>, vector<8x128xf32>
    %cst_41 = arith.constant dense<0.000000e+00> : vector<8x128xf32>
    %102 = tpu.matmul %87, %101, %cst_41 {dimension_numbers = #tpu.dot_dimension_numbers<[1], [0], [0], [1], [0, 0, 1, 1], [], []>} : vector<8x8xf32>, vector<8x128xf32>, vector<8x128xf32> -> vector<8x128xf32>
    %c1_42 = arith.constant 1 : index
    %c0_43 = arith.constant 0 : index
    %c0_44 = arith.constant 0 : index
    %103 = vector.load %arg4[%c1_42, %c0_43, %c0_44] : memref<3x8x8xf32, #tpu.memory_space<vmem>>, vector<1x8x8xf32>
    %104 = vector.shape_cast %103 : vector<1x8x8xf32> to vector<8x8xf32>
    %c0_i32_45 = arith.constant 0 : i32
    %105 = vector.broadcast %c0_i32_45 : i32 to vector<1x128xi32>
    %106 = arith.addi %0, %105 : vector<1x128xi32>
    %c0_i32_46 = arith.constant 0 : i32
    %107 = vector.broadcast %c0_i32_46 : i32 to vector<1x128xi32>
    %108 = arith.cmpi sge, %106, %107 : vector<1x128xi32>
    %c0_i32_47 = arith.constant 0 : i32
    %109 = vector.broadcast %c0_i32_47 : i32 to vector<1x128xi32>
    %110 = arith.addi %0, %109 : vector<1x128xi32>
    %c8_i32_48 = arith.constant 8 : i32
    %111 = vector.broadcast %c8_i32_48 : i32 to vector<1x128xi32>
    %112 = arith.cmpi slt, %110, %111 : vector<1x128xi32>
    %113 = arith.andi %108, %112 : vector<1x128xi1>
    %cst_49 = arith.constant 0.000000e+00 : f32
    %114 = vector.broadcast %cst_49 : f32 to vector<8x128xf32>
    %115 = vector.shape_cast %113 : vector<1x128xi1> to vector<1x128xi1>
    %116 = vector.broadcast %115 : vector<1x128xi1> to vector<8x128xi1>
    %117 = arith.select %116, %85, %114 : vector<8x128xi1>, vector<8x128xf32>
    %cst_50 = arith.constant dense<0.000000e+00> : vector<8x128xf32>
    %118 = tpu.matmul %104, %117, %cst_50 {dimension_numbers = #tpu.dot_dimension_numbers<[1], [0], [0], [1], [0, 0, 1, 1], [], []>} : vector<8x8xf32>, vector<8x128xf32>, vector<8x128xf32> -> vector<8x128xf32>
    %119 = arith.addf %102, %118 : vector<8x128xf32>
    %c2_51 = arith.constant 2 : index
    %c0_52 = arith.constant 0 : index
    %c0_53 = arith.constant 0 : index
    %120 = vector.load %arg4[%c2_51, %c0_52, %c0_53] : memref<3x8x8xf32, #tpu.memory_space<vmem>>, vector<1x8x8xf32>
    %121 = vector.shape_cast %120 : vector<1x8x8xf32> to vector<8x8xf32>
    %c126_i32 = arith.constant 126 : i32
    %122 = tpu.dynamic_rotate %85 by %c126_i32 dim 1 : vector<8x128xf32>, i32 -> vector<8x128xf32>
    %c2_i32_54 = arith.constant 2 : i32
    %123 = vector.broadcast %c2_i32_54 : i32 to vector<1x128xi32>
    %124 = arith.addi %0, %123 : vector<1x128xi32>
    %c0_i32_55 = arith.constant 0 : i32
    %125 = vector.broadcast %c0_i32_55 : i32 to vector<1x128xi32>
    %126 = arith.cmpi sge, %124, %125 : vector<1x128xi32>
    %c2_i32_56 = arith.constant 2 : i32
    %127 = vector.broadcast %c2_i32_56 : i32 to vector<1x128xi32>
    %128 = arith.addi %0, %127 : vector<1x128xi32>
    %c8_i32_57 = arith.constant 8 : i32
    %129 = vector.broadcast %c8_i32_57 : i32 to vector<1x128xi32>
    %130 = arith.cmpi slt, %128, %129 : vector<1x128xi32>
    %131 = arith.andi %126, %130 : vector<1x128xi1>
    %cst_58 = arith.constant 0.000000e+00 : f32
    %132 = vector.broadcast %cst_58 : f32 to vector<8x128xf32>
    %133 = vector.shape_cast %131 : vector<1x128xi1> to vector<1x128xi1>
    %134 = vector.broadcast %133 : vector<1x128xi1> to vector<8x128xi1>
    %135 = arith.select %134, %122, %132 : vector<8x128xi1>, vector<8x128xf32>
    %cst_59 = arith.constant dense<0.000000e+00> : vector<8x128xf32>
    %136 = tpu.matmul %121, %135, %cst_59 {dimension_numbers = #tpu.dot_dimension_numbers<[1], [0], [0], [1], [0, 0, 1, 1], [], []>} : vector<8x8xf32>, vector<8x128xf32>, vector<8x128xf32> -> vector<8x128xf32>
    %137 = arith.addf %119, %136 : vector<8x128xf32>
    %138 = vector.extract_strided_slice %1 {offsets = [0, 2], sizes = [8, 1], strides = [1, 1]} : vector<8x6xf32> to vector<8x1xf32>
    %139 = vector.extract_strided_slice %1 {offsets = [0, 3], sizes = [8, 1], strides = [1, 1]} : vector<8x6xf32> to vector<8x1xf32>
    %cst_60 = arith.constant dense<0.000000e+00> : vector<8xf32>
    %140 = vector.multi_reduction <add>, %137, %cst_60 [1] : vector<8x128xf32> to vector<8xf32>
    %141 = vector.shape_cast %140 : vector<8xf32> to vector<8x1xf32>
    %cst_61 = arith.constant 6.250000e-02 : f32
    %142 = vector.broadcast %cst_61 : f32 to vector<8x1xf32>
    %143 = arith.mulf %141, %142 : vector<8x1xf32>
    %144 = vector.broadcast %143 : vector<8x1xf32> to vector<8x128xf32>
    %145 = arith.subf %137, %144 : vector<8x128xf32>
    %146 = arith.mulf %145, %145 : vector<8x128xf32>
    %cst_62 = arith.constant dense<0.000000e+00> : vector<8xf32>
    %147 = vector.multi_reduction <add>, %146, %cst_62 [1] : vector<8x128xf32> to vector<8xf32>
    %148 = vector.shape_cast %147 : vector<8xf32> to vector<8x1xf32>
    %149 = arith.mulf %143, %143 : vector<8x1xf32>
    %cst_63 = arith.constant 1.120000e+02 : f32
    %150 = vector.broadcast %cst_63 : f32 to vector<8x1xf32>
    %151 = arith.mulf %150, %149 : vector<8x1xf32>
    %152 = arith.subf %148, %151 : vector<8x1xf32>
    %cst_64 = arith.constant 6.250000e-02 : f32
    %153 = vector.broadcast %cst_64 : f32 to vector<8x1xf32>
    %154 = arith.mulf %152, %153 : vector<8x1xf32>
    %cst_65 = arith.constant 0.000000e+00 : f32
    %155 = vector.broadcast %cst_65 : f32 to vector<8x1xf32>
    %156 = arith.maximumf %154, %155 : vector<8x1xf32>
    %cst_66 = arith.constant 9.99999974E-6 : f32
    %157 = vector.broadcast %cst_66 : f32 to vector<8x1xf32>
    %158 = arith.addf %156, %157 : vector<8x1xf32>
    %159 = math.rsqrt %158 : vector<8x1xf32>
    %160 = arith.mulf %138, %159 : vector<8x1xf32>
    %161 = arith.mulf %143, %160 : vector<8x1xf32>
    %162 = arith.subf %139, %161 : vector<8x1xf32>
    %163 = vector.broadcast %160 : vector<8x1xf32> to vector<8x128xf32>
    %164 = arith.mulf %137, %163 : vector<8x128xf32>
    %165 = vector.broadcast %162 : vector<8x1xf32> to vector<8x128xf32>
    %166 = arith.addf %164, %165 : vector<8x128xf32>
    %c0_67 = arith.constant 0 : index
    %c0_68 = arith.constant 0 : index
    %167 = vector.load %arg6[%c0_67, %c0_68] : memref<8x4xf32, #tpu.memory_space<vmem>>, vector<8x4xf32>
    %cst_69 = arith.constant dense<0.000000e+00> : vector<8x128xf32>
    %168 = tpu.matmul %167, %2, %cst_69 {dimension_numbers = #tpu.dot_dimension_numbers<[1], [0], [0], [1], [0, 0, 1, 1], [], []>} : vector<8x4xf32>, vector<4x128xf32>, vector<8x128xf32> -> vector<8x128xf32>
    %169 = vector.extract_strided_slice %1 {offsets = [0, 4], sizes = [8, 1], strides = [1, 1]} : vector<8x6xf32> to vector<8x1xf32>
    %170 = vector.extract_strided_slice %1 {offsets = [0, 5], sizes = [8, 1], strides = [1, 1]} : vector<8x6xf32> to vector<8x1xf32>
    %cst_70 = arith.constant dense<0.000000e+00> : vector<8xf32>
    %171 = vector.multi_reduction <add>, %168, %cst_70 [1] : vector<8x128xf32> to vector<8xf32>
    %172 = vector.shape_cast %171 : vector<8xf32> to vector<8x1xf32>
    %cst_71 = arith.constant 6.250000e-02 : f32
    %173 = vector.broadcast %cst_71 : f32 to vector<8x1xf32>
    %174 = arith.mulf %172, %173 : vector<8x1xf32>
    %175 = vector.broadcast %174 : vector<8x1xf32> to vector<8x128xf32>
    %176 = arith.subf %168, %175 : vector<8x128xf32>
    %177 = arith.mulf %176, %176 : vector<8x128xf32>
    %cst_72 = arith.constant dense<0.000000e+00> : vector<8xf32>
    %178 = vector.multi_reduction <add>, %177, %cst_72 [1] : vector<8x128xf32> to vector<8xf32>
    %179 = vector.shape_cast %178 : vector<8xf32> to vector<8x1xf32>
    %180 = arith.mulf %174, %174 : vector<8x1xf32>
    %cst_73 = arith.constant 1.120000e+02 : f32
    %181 = vector.broadcast %cst_73 : f32 to vector<8x1xf32>
    %182 = arith.mulf %181, %180 : vector<8x1xf32>
    %183 = arith.subf %179, %182 : vector<8x1xf32>
    %cst_74 = arith.constant 6.250000e-02 : f32
    %184 = vector.broadcast %cst_74 : f32 to vector<8x1xf32>
    %185 = arith.mulf %183, %184 : vector<8x1xf32>
    %cst_75 = arith.constant 0.000000e+00 : f32
    %186 = vector.broadcast %cst_75 : f32 to vector<8x1xf32>
    %187 = arith.maximumf %185, %186 : vector<8x1xf32>
    %cst_76 = arith.constant 9.99999974E-6 : f32
    %188 = vector.broadcast %cst_76 : f32 to vector<8x1xf32>
    %189 = arith.addf %187, %188 : vector<8x1xf32>
    %190 = math.rsqrt %189 : vector<8x1xf32>
    %191 = arith.mulf %169, %190 : vector<8x1xf32>
    %192 = arith.mulf %174, %191 : vector<8x1xf32>
    %193 = arith.subf %170, %192 : vector<8x1xf32>
    %194 = vector.broadcast %191 : vector<8x1xf32> to vector<8x128xf32>
    %195 = arith.mulf %168, %194 : vector<8x128xf32>
    %196 = vector.broadcast %193 : vector<8x1xf32> to vector<8x128xf32>
    %197 = arith.addf %195, %196 : vector<8x128xf32>
    %198 = arith.addf %166, %197 : vector<8x128xf32>
    %cst_77 = arith.constant 0.000000e+00 : f32
    %199 = vector.broadcast %cst_77 : f32 to vector<8x128xf32>
    %200 = arith.maximumf %198, %199 : vector<8x128xf32>
    %c0_78 = arith.constant 0 : index
    %c0_79 = arith.constant 0 : index
    %201 = vector.load %arg7[%c0_78, %c0_79] : memref<8x128xf32, #tpu.memory_space<vmem>>, vector<8x128xf32>
    tpu.vector_store %arg7[%c0_78, %c0_79], %200 {strides = array<i32>} : memref<8x128xf32, #tpu.memory_space<vmem>>, vector<8x128xf32>,
    return
  }
  func.func @transform_0(%arg0: i32) -> (i32, i32) {
    %c0_i32 = arith.constant 0 : i32
    %c0_i32_0 = arith.constant 0 : i32
    %c0_i32_1 = arith.constant 0 : i32
    return %c0_i32, %c0_i32_0 : i32, i32
  }
  func.func @transform_1(%arg0: i32) -> (i32, i32) {
    %c0_i32 = arith.constant 0 : i32
    %c0_i32_0 = arith.constant 0 : i32
    %c0_i32_1 = arith.constant 0 : i32
    return %c0_i32, %c0_i32_0 : i32, i32
  }
  func.func @transform_2(%arg0: i32) -> (i32, i32, i32) {
    %c0_i32 = arith.constant 0 : i32
    %c0_i32_0 = arith.constant 0 : i32
    %c0_i32_1 = arith.constant 0 : i32
    %c0_i32_2 = arith.constant 0 : i32
    return %c0_i32, %c0_i32_0, %c0_i32_1 : i32, i32, i32
  }
  func.func @transform_3(%arg0: i32) -> (i32, i32, i32) {
    %c0_i32 = arith.constant 0 : i32
    %c0_i32_0 = arith.constant 0 : i32
    %c0_i32_1 = arith.constant 0 : i32
    %c0_i32_2 = arith.constant 0 : i32
    return %c0_i32, %c0_i32_0, %c0_i32_1 : i32, i32, i32
  }
  func.func @transform_4(%arg0: i32) -> (i32, i32) {
    %c0_i32 = arith.constant 0 : i32
    %c0_i32_0 = arith.constant 0 : i32
    %c0_i32_1 = arith.constant 0 : i32
    return %c0_i32, %c0_i32_0 : i32, i32
  }
  func.func @transform_5(%arg0: i32) -> (i32, i32) {
    %c0_i32 = arith.constant 0 : i32
    %c0_i32_0 = arith.constant 0 : i32
    %c0_i32_1 = arith.constant 0 : i32
    return %c0_i32, %c0_i32_0 : i32, i32
  }
  func.func @transform_6(%arg0: i32) -> (i32, i32) {
    %c0_i32 = arith.constant 0 : i32
    %c0_i32_0 = arith.constant 0 : i32
    %c0_i32_1 = arith.constant 0 : i32
    return %c0_i32, %c0_i32_0 : i32, i32
  }
}

</mosaic_0001>

<llo_original>
// kernel: tpu_custom_call.1
$region0: #{tpu_custom_call.1}
  #allocation0 [shape = 'u32[]', space=smem, size = 0x4, offset = 0x4, fixed_abs, tag = 'smem constant byte address 0x4 - core index']
  #allocation1 [shape = 'u32[144,128]{1,0:T(1,128)}', space=vmem, size = 0x12000, scoped, tag = 'internal scratch']
  %s0 = inlined_call_operand.vmem [shape: f32[4,128], index: 0, kind: input, shape index: {}]
  %s1 = inlined_call_operand.vmem [shape: s32[1,128], index: 1, kind: input, shape index: {}]
  %s2 = inlined_call_operand.vmem [shape: f32[3,8,4], index: 2, kind: input, shape index: {}]
  %s3 = inlined_call_operand.vmem [shape: f32[3,8,8], index: 3, kind: input, shape index: {}]
  %s4 = inlined_call_operand.vmem [shape: f32[8,6], index: 4, kind: input, shape index: {}]
  %s5 = inlined_call_operand.vmem [shape: f32[8,4], index: 5, kind: input, shape index: {}]
  %s6 = inlined_call_operand.hbm [shape: f32[8,128], index: 6, kind: output, shape index: {}]
  %s7 = sld [smem:[#allocation0]]
  $region34: #{tpu_custom_call.1} parent=0
    _
  %s9 = ssub.s32 1, %s7
  %s10 = scalar_select 0, %s9, %s7
  $region1: #{tpu_custom_call.1} parent=0
    #allocation2 [shape = 'u8[4096]{0}', space=vmem, size = 0x1000, scoped, tag = 'output window, operand 0, single buffered']
    #allocation3 [shape = 's32[1]{0}', space=sflag, size = 0x4, scoped, tag = 'scoped memory for tpu_custom_call.1']
    %11 = vsyncpa [#allocation3], 0
    // Predicated region
    $region2: #{tpu_custom_call.1} parent=1 // pred_check
      _
    $region3: #{tpu_custom_call.1} parent=1 // pred_check_branch
      %13 = sbr.rel (0) target = $region5
    $region4: #{tpu_custom_call.1} parent=1 // pred_region
      _
    $region5: #{tpu_custom_call.1} parent=1 // pred_fallthru
      _
    // Predicated region
    $region6: #{tpu_custom_call.1} parent=1 // pred_check
      _
    $region7: #{tpu_custom_call.1} parent=1 // pred_check_branch
      %15 = sbr.rel (0) target = $region9
    $region8: #{tpu_custom_call.1} parent=1 // pred_region
      _
    $region9: #{tpu_custom_call.1} parent=1 // pred_fallthru
      _
    // Predicated region
    $region10: #{tpu_custom_call.1} parent=1 // pred_check
      _
    $region11: #{tpu_custom_call.1} parent=1 // pred_check_branch
      %17 = sbr.rel (0) target = $region13
    $region12: #{tpu_custom_call.1} parent=1 // pred_region
      _
    $region13: #{tpu_custom_call.1} parent=1 // pred_fallthru
      _
    // Predicated region
    $region14: #{tpu_custom_call.1} parent=1 // pred_check
      _
    $region15: #{tpu_custom_call.1} parent=1 // pred_check_branch
      %19 = sbr.rel (0) target = $region17
    $region16: #{tpu_custom_call.1} parent=1 // pred_region
      _
    $region17: #{tpu_custom_call.1} parent=1 // pred_fallthru
      _
    // Predicated region
    $region18: #{tpu_custom_call.1} parent=1 // pred_check
      _
    $region19: #{tpu_custom_call.1} parent=1 // pred_check_branch
      %21 = sbr.rel (0) target = $region21
    $region20: #{tpu_custom_call.1} parent=1 // pred_region
      _
    $region21: #{tpu_custom_call.1} parent=1 // pred_fallthru
      _
    // Predicated region
    $region22: #{tpu_custom_call.1} parent=1 // pred_check
      _
    $region23: #{tpu_custom_call.1} parent=1 // pred_check_branch
      %23 = sbr.rel (0) target = $region25
    $region24: #{tpu_custom_call.1} parent=1 // pred_region
      _
    $region25: #{tpu_custom_call.1} parent=1 // pred_fallthru
      _
    %v24 = vld [vmem:[%s1] sm:$0x1]
    %v25 = vld [vmem:[%s4] sm:$0xff]
    %v26 = vld [vmem:[%s0] sm:$0xf]
    %v27 = vld [vmem:[%s2] sm:$0xff]
    %28 = vrot.lane.b32.xlu0 %v26, 1
    %v29 = vpop.permute.xlu0 %28
    %v30 = vadd.s32 %v24, 4294967295
    %vm31 = vcmp.ge.s32.totalorder %v30, 0
    %vm32 = vcmp.lt.s32.totalorder %v30, 8
    %vm33 = vmand %vm31, %vm32
    %v34 = vsel %vm33, 1, 0
    %v35 = vlaneseq
    %v36 = vshrl.u32 %v35, 7
    %v37 = vsub.s32 0, %v36
    %v38 = vrot.slane %v34, %v37
    %vm39 = vcmp.eq.s32.totalorder %v38, 1
    %v40 = vsel %vm39, %v29, 0.0
    %s41 = scalar_lea.vmem %s2, 8
    %v42 = vld [vmem:[%s41] sm:$0xff]
    %vm43 = vcmp.ge.s32.totalorder %v24, 0
    %vm44 = vcmp.lt.s32.totalorder %v24, 8
    %vm45 = vmand %vm43, %vm44
    %v46 = vsel %vm45, 1, 0
    %v47 = vlaneseq
    %v48 = vshrl.u32 %v47, 7
    %v49 = vsub.s32 0, %v48
    %v50 = vrot.slane %v46, %v49
    %vm51 = vcmp.eq.s32.totalorder %v50, 1
    %v52 = vsel %vm51, %v26, 0.0
    %vm53 = vcmask 31744
    %v55 = vsel %vm53, %v42, 0
    %vm57 = vcmask 1043456
    %v59 = vsel %vm57, %v52, 0
    %61 = vmatprep.subr.mxu0 0.0
    %62 = vmatpush1.msra.mxu0 0.0
    %63 = vmatprep.subr.mxu0 0.0
    %64 = vmatpush1.msra.mxu0 0.0
    %65 = vmatprep.subr.mxu0 0.0
    %66 = vmatpush1.msra.mxu0 0.0
    %67 = vmatprep.subr.mxu0 0.0
    %68 = vmatpush1.msra.mxu0 0.0
    %69 = vmatprep.subr.mxu0 0.0
    %70 = vmatpush1.msra.mxu0 0.0
    %71 = vmatprep.subr.mxu0 0.0
    %72 = vmatpush1.msra.mxu0 0.0
    %73 = vmatprep.subr.mxu0 0.0
    %74 = vmatpush1.msra.mxu0 0.0
    %75 = vmatprep.subr.mxu0 0.0
    %76 = vmatpush1.msra.mxu0 0.0
    %77 = vmatprep.subr.mxu0 0.0
    %78 = vmatpush1.msra.mxu0 0.0
    %79 = vmatprep.subr.mxu0 0.0
    %80 = vmatpush1.msra.mxu0 0.0
    %81 = vmatprep.subr.mxu0 0.0
    %82 = vmatpush1.msra.mxu0 0.0
    %83 = vmatprep.subr.mxu0 0.0
    %84 = vmatpush1.msra.mxu0 0.0
    %85 = vmatprep.subr.mxu0 0.0
    %86 = vmatpush1.msra.mxu0 0.0
    %87 = vmatprep.subr.mxu0 0.0
    %88 = vmatpush1.msra.mxu0 0.0
    %89 = vmatprep.subr.mxu0 0.0
    %90 = vmatpush1.msra.mxu0 0.0
    %91 = vmatprep.subr.mxu0 0.0
    %92 = vmatpush1.msra.mxu0 %v59
    %93 = vmatprep.subr.mxu0 0.0
    %94 = vmatpush2.msra.mxu0 0.0
    %95 = vmatprep.subr.mxu0 0.0
    %96 = vmatpush2.msra.mxu0 0.0
    %97 = vmatprep.subr.mxu0 0.0
    %98 = vmatpush2.msra.mxu0 0.0
    %99 = vmatprep.subr.mxu0 0.0
    %100 = vmatpush2.msra.mxu0 0.0
    %101 = vmatprep.subr.mxu0 0.0
    %102 = vmatpush2.msra.mxu0 0.0
    %103 = vmatprep.subr.mxu0 0.0
    %104 = vmatpush2.msra.mxu0 0.0
    %105 = vmatprep.subr.mxu0 0.0
    %106 = vmatpush2.msra.mxu0 0.0
    %107 = vmatprep.subr.mxu0 0.0
    %108 = vmatpush2.msra.mxu0 0.0
    %109 = vmatprep.subr.mxu0 0.0
    %110 = vmatpush2.msra.mxu0 0.0
    %111 = vmatprep.subr.mxu0 0.0
    %112 = vmatpush2.msra.mxu0 0.0
    %113 = vmatprep.subr.mxu0 0.0
    %114 = vmatpush2.msra.mxu0 0.0
    %115 = vmatprep.subr.mxu0 0.0
    %116 = vmatpush2.msra.mxu0 0.0
    %117 = vmatprep.subr.mxu0 0.0
    %118 = vmatpush2.msra.mxu0 0.0
    %119 = vmatprep.subr.mxu0 0.0
    %120 = vmatpush2.msra.mxu0 0.0
    %121 = vmatprep.subr.mxu0 0.0
    %122 = vmatpush2.msra.mxu0 0.0
    %123 = vmatprep.subr.mxu0 0.0
    %124 = vmatpush2.msra.mxu0 0.0
    %125 = vmatprep.mubr.f32.mxu0 0.0
    %126 = vmatmul.mubr.f32.gmra.mxu0 %v55
    %v127 = vpop.f32.mrf.mxu0
    %v128 = vadd.f32 0.0, %v127
    %v129 = vpop.f32.mrf.mxu0
    %130 = vdwg.mxu0
    %v132 = vsel %vm53, %v27, 0
    %v135 = vsel %vm57, %v40, 0
    %137 = vmatprep.subr.mxu0 0.0
    %138 = vmatpush1.msra.mxu0 0.0
    %139 = vmatprep.subr.mxu0 0.0
    %140 = vmatpush1.msra.mxu0 0.0
    %141 = vmatprep.subr.mxu0 0.0
    %142 = vmatpush1.msra.mxu0 0.0
    %143 = vmatprep.subr.mxu0 0.0
    %144 = vmatpush1.msra.mxu0 0.0
    %145 = vmatprep.subr.mxu0 0.0
    %146 = vmatpush1.msra.mxu0 0.0
    %147 = vmatprep.subr.mxu0 0.0
    %148 = vmatpush1.msra.mxu0 0.0
    %149 = vmatprep.subr.mxu0 0.0
    %150 = vmatpush1.msra.mxu0 0.0
    %151 = vmatprep.subr.mxu0 0.0
    %152 = vmatpush1.msra.mxu0 0.0
    %153 = vmatprep.subr.mxu0 0.0
    %154 = vmatpush1.msra.mxu0 0.0
    %155 = vmatprep.subr.mxu0 0.0
    %156 = vmatpush1.msra.mxu0 0.0
    %157 = vmatprep.subr.mxu0 0.0
    %158 = vmatpush1.msra.mxu0 0.0
    %159 = vmatprep.subr.mxu0 0.0
    %160 = vmatpush1.msra.mxu0 0.0
    %161 = vmatprep.subr.mxu0 0.0
    %162 = vmatpush1.msra.mxu0 0.0
    %163 = vmatprep.subr.mxu0 0.0
    %164 = vmatpush1.msra.mxu0 0.0
    %165 = vmatprep.subr.mxu0 0.0
    %166 = vmatpush1.msra.mxu0 0.0
    %167 = vmatprep.subr.mxu0 0.0
    %168 = vmatpush1.msra.mxu0 %v135
    %169 = vmatprep.subr.mxu0 0.0
    %170 = vmatpush2.msra.mxu0 0.0
    %171 = vmatprep.subr.mxu0 0.0
    %172 = vmatpush2.msra.mxu0 0.0
    %173 = vmatprep.subr.mxu0 0.0
    %174 = vmatpush2.msra.mxu0 0.0
    %175 = vmatprep.subr.mxu0 0.0
    %176 = vmatpush2.msra.mxu0 0.0
    %177 = vmatprep.subr.mxu0 0.0
    %178 = vmatpush2.msra.mxu0 0.0
    %179 = vmatprep.subr.mxu0 0.0
    %180 = vmatpush2.msra.mxu0 0.0
    %181 = vmatprep.subr.mxu0 0.0
    %182 = vmatpush2.msra.mxu0 0.0
    %183 = vmatprep.subr.mxu0 0.0
    %184 = vmatpush2.msra.mxu0 0.0
    %185 = vmatprep.subr.mxu0 0.0
    %186 = vmatpush2.msra.mxu0 0.0
    %187 = vmatprep.subr.mxu0 0.0
    %188 = vmatpush2.msra.mxu0 0.0
    %189 = vmatprep.subr.mxu0 0.0
    %190 = vmatpush2.msra.mxu0 0.0
    %191 = vmatprep.subr.mxu0 0.0
    %192 = vmatpush2.msra.mxu0 0.0
    %193 = vmatprep.subr.mxu0 0.0
    %194 = vmatpush2.msra.mxu0 0.0
    %195 = vmatprep.subr.mxu0 0.0
    %196 = vmatpush2.msra.mxu0 0.0
    %197 = vmatprep.subr.mxu0 0.0
    %198 = vmatpush2.msra.mxu0 0.0
    %199 = vmatprep.subr.mxu0 0.0
    %200 = vmatpush2.msra.mxu0 0.0
    %201 = vmatprep.mubr.f32.mxu0 0.0
    %202 = vmatmul.mubr.f32.gmra.mxu0 %v132
    %v203 = vpop.f32.mrf.mxu0
    %v204 = vadd.f32 %v128, %v203
    %v205 = vpop.f32.mrf.mxu0
    %206 = vdwg.mxu0
    %s207 = scalar_lea.vmem %s2, 16
    %v208 = vld [vmem:[%s207] sm:$0xff]
    %209 = vrot.lane.b32.xlu0 %v26, 127
    %v210 = vpop.permute.xlu0 %209
    %v211 = vadd.s32 %v24, 1
    %vm212 = vcmp.ge.s32.totalorder %v211, 0
    %vm213 = vcmp.lt.s32.totalorder %v211, 8
    %vm214 = vmand %vm212, %vm213
    %v215 = vsel %vm214, 1, 0
    %v216 = vlaneseq
    %v217 = vshrl.u32 %v216, 7
    %v218 = vsub.s32 0, %v217
    %v219 = vrot.slane %v215, %v218
    %vm220 = vcmp.eq.s32.totalorder %v219, 1
    %v221 = vsel %vm220, %v210, 0.0
    %v223 = vsel %vm53, %v208, 0
    %v226 = vsel %vm57, %v221, 0
    %228 = vmatprep.subr.mxu0 0.0
    %229 = vmatpush1.msra.mxu0 0.0
    %230 = vmatprep.subr.mxu0 0.0
    %231 = vmatpush1.msra.mxu0 0.0
    %232 = vmatprep.subr.mxu0 0.0
    %233 = vmatpush1.msra.mxu0 0.0
    %234 = vmatprep.subr.mxu0 0.0
    %235 = vmatpush1.msra.mxu0 0.0
    %236 = vmatprep.subr.mxu0 0.0
    %237 = vmatpush1.msra.mxu0 0.0
    %238 = vmatprep.subr.mxu0 0.0
    %239 = vmatpush1.msra.mxu0 0.0
    %240 = vmatprep.subr.mxu0 0.0
    %241 = vmatpush1.msra.mxu0 0.0
    %242 = vmatprep.subr.mxu0 0.0
    %243 = vmatpush1.msra.mxu0 0.0
    %244 = vmatprep.subr.mxu0 0.0
    %245 = vmatpush1.msra.mxu0 0.0
    %246 = vmatprep.subr.mxu0 0.0
    %247 = vmatpush1.msra.mxu0 0.0
    %248 = vmatprep.subr.mxu0 0.0
    %249 = vmatpush1.msra.mxu0 0.0
    %250 = vmatprep.subr.mxu0 0.0
    %251 = vmatpush1.msra.mxu0 0.0
    %252 = vmatprep.subr.mxu0 0.0
    %253 = vmatpush1.msra.mxu0 0.0
    %254 = vmatprep.subr.mxu0 0.0
    %255 = vmatpush1.msra.mxu0 0.0
    %256 = vmatprep.subr.mxu0 0.0
    %257 = vmatpush1.msra.mxu0 0.0
    %258 = vmatprep.subr.mxu0 0.0
    %259 = vmatpush1.msra.mxu0 %v226
    %260 = vmatprep.subr.mxu0 0.0
    %261 = vmatpush2.msra.mxu0 0.0
    %262 = vmatprep.subr.mxu0 0.0
    %263 = vmatpush2.msra.mxu0 0.0
    %264 = vmatprep.subr.mxu0 0.0
    %265 = vmatpush2.msra.mxu0 0.0
    %266 = vmatprep.subr.mxu0 0.0
    %267 = vmatpush2.msra.mxu0 0.0
    %268 = vmatprep.subr.mxu0 0.0
    %269 = vmatpush2.msra.mxu0 0.0
    %270 = vmatprep.subr.mxu0 0.0
    %271 = vmatpush2.msra.mxu0 0.0
    %272 = vmatprep.subr.mxu0 0.0
    %273 = vmatpush2.msra.mxu0 0.0
    %274 = vmatprep.subr.mxu0 0.0
    %275 = vmatpush2.msra.mxu0 0.0
    %276 = vmatprep.subr.mxu0 0.0
    %277 = vmatpush2.msra.mxu0 0.0
    %278 = vmatprep.subr.mxu0 0.0
    %279 = vmatpush2.msra.mxu0 0.0
    %280 = vmatprep.subr.mxu0 0.0
    %281 = vmatpush2.msra.mxu0 0.0
    %282 = vmatprep.subr.mxu0 0.0
    %283 = vmatpush2.msra.mxu0 0.0
    %284 = vmatprep.subr.mxu0 0.0
    %285 = vmatpush2.msra.mxu0 0.0
    %286 = vmatprep.subr.mxu0 0.0
    %287 = vmatpush2.msra.mxu0 0.0
    %288 = vmatprep.subr.mxu0 0.0
    %289 = vmatpush2.msra.mxu0 0.0
    %290 = vmatprep.subr.mxu0 0.0
    %291 = vmatpush2.msra.mxu0 0.0
    %292 = vmatprep.mubr.f32.mxu0 0.0
    %293 = vmatmul.mubr.f32.gmra.mxu0 %v223
    %v294 = vpop.f32.mrf.mxu0
    %v295 = vadd.f32 0.0, %v294
    %v296 = vpop.f32.mrf.mxu0
    %297 = vdwg.mxu0
    %v298 = vadd.f32 %v204, %v295
    %299 = vadd.xlane.f32.xlu0 %v298
    %v300 = vpop.xlane.xlu0 %299
    %v301 = vmul.f32 %v300, 0.0625
    %v302 = vsub.f32 %v298, %v301
    %v303 = vmul.f32 %v302, %v302
    %304 = vadd.xlane.f32.xlu0 %v303
    %v305 = vpop.xlane.xlu0 %304
    %v306 = vmul.f32 %v301, %v301
    %v307 = vmul.f32 %v306, 112.0
    %v308 = vsub.f32 %v305, %v307
    %v309 = vmul.f32 %v308, 0.0625
    %v310 = vmax.f32 %v309, 0.0
    %v311 = vadd.f32 %v310, 1e-05
    %v312 = vrsqrt.pop %v311
    %v313 = vmul.f32 %v25, %v312
    %v314 = vmul.f32 %v301, %v313
    %316 = vrot.lane.b32.xlu0 %v314, 1
    %v317 = vpop.permute.xlu0 %316
    %v319 = vsub.f32 %v25, %v317
    %321 = vset.pattern.permute.xlu0 0
    %322 = vperm.xlu0 %321, %v313
    %v323 = vpop.permute.xlu0 %322
    %v325 = vmul.f32 %v298, %v323
    %327 = vset.pattern.permute.xlu0 1
    %328 = vperm.xlu0 %327, %v319
    %v329 = vpop.permute.xlu0 %328
    %v331 = vadd.f32 %v325, %v329
    %v332 = vmax.f32 %v331, 0.0
    %v333 = vld [vmem:[%s3] sm:$0xff]
    %334 = vrot.lane.b32.xlu0 %v332, 2
    %v335 = vpop.permute.xlu0 %334
    %v336 = vadd.s32 %v24, 4294967294
    %vm337 = vcmp.ge.s32.totalorder %v336, 0
    %vm338 = vcmp.lt.s32.totalorder %v336, 8
    %vm339 = vmand %vm337, %vm338
    %v340 = vsel %vm339, 1, 0
    %v341 = vlaneseq
    %v342 = vshrl.u32 %v341, 7
    %v343 = vsub.s32 0, %v342
    %v344 = vrot.slane %v340, %v343
    %vm345 = vcmp.eq.s32.totalorder %v344, 1
    %v346 = vsel %vm345, %v335, 0.0
    %s347 = scalar_lea.vmem %s3, 8
    %v348 = vld [vmem:[%s347] sm:$0xff]
    %v349 = vsel %vm51, %v332, 0.0
    %vm350 = vcmask 64512
    %v352 = vsel %vm350, %v348, 0
    %354 = vmatprep.subr.mxu0 0.0
    %355 = vmatpush1.msra.mxu0 0.0
    %356 = vmatprep.subr.mxu0 0.0
    %357 = vmatpush1.msra.mxu0 0.0
    %358 = vmatprep.subr.mxu0 0.0
    %359 = vmatpush1.msra.mxu0 0.0
    %360 = vmatprep.subr.mxu0 0.0
    %361 = vmatpush1.msra.mxu0 0.0
    %362 = vmatprep.subr.mxu0 0.0
    %363 = vmatpush1.msra.mxu0 0.0
    %364 = vmatprep.subr.mxu0 0.0
    %365 = vmatpush1.msra.mxu0 0.0
    %366 = vmatprep.subr.mxu0 0.0
    %367 = vmatpush1.msra.mxu0 0.0
    %368 = vmatprep.subr.mxu0 0.0
    %369 = vmatpush1.msra.mxu0 0.0
    %370 = vmatprep.subr.mxu0 0.0
    %371 = vmatpush1.msra.mxu0 0.0
    %372 = vmatprep.subr.mxu0 0.0
    %373 = vmatpush1.msra.mxu0 0.0
    %374 = vmatprep.subr.mxu0 0.0
    %375 = vmatpush1.msra.mxu0 0.0
    %376 = vmatprep.subr.mxu0 0.0
    %377 = vmatpush1.msra.mxu0 0.0
    %378 = vmatprep.subr.mxu0 0.0
    %379 = vmatpush1.msra.mxu0 0.0
    %380 = vmatprep.subr.mxu0 0.0
    %381 = vmatpush1.msra.mxu0 0.0
    %382 = vmatprep.subr.mxu0 0.0
    %383 = vmatpush1.msra.mxu0 0.0
    %384 = vmatprep.subr.mxu0 0.0
    %385 = vmatpush1.msra.mxu0 %v349
    %386 = vmatprep.subr.mxu0 0.0
    %387 = vmatpush2.msra.mxu0 0.0
    %388 = vmatprep.subr.mxu0 0.0
    %389 = vmatpush2.msra.mxu0 0.0
    %390 = vmatprep.subr.mxu0 0.0
    %391 = vmatpush2.msra.mxu0 0.0
    %392 = vmatprep.subr.mxu0 0.0
    %393 = vmatpush2.msra.mxu0 0.0
    %394 = vmatprep.subr.mxu0 0.0
    %395 = vmatpush2.msra.mxu0 0.0
    %396 = vmatprep.subr.mxu0 0.0
    %397 = vmatpush2.msra.mxu0 0.0
    %398 = vmatprep.subr.mxu0 0.0
    %399 = vmatpush2.msra.mxu0 0.0
    %400 = vmatprep.subr.mxu0 0.0
    %401 = vmatpush2.msra.mxu0 0.0
    %402 = vmatprep.subr.mxu0 0.0
    %403 = vmatpush2.msra.mxu0 0.0
    %404 = vmatprep.subr.mxu0 0.0
    %405 = vmatpush2.msra.mxu0 0.0
    %406 = vmatprep.subr.mxu0 0.0
    %407 = vmatpush2.msra.mxu0 0.0
    %408 = vmatprep.subr.mxu0 0.0
    %409 = vmatpush2.msra.mxu0 0.0
    %410 = vmatprep.subr.mxu0 0.0
    %411 = vmatpush2.msra.mxu0 0.0
    %412 = vmatprep.subr.mxu0 0.0
    %413 = vmatpush2.msra.mxu0 0.0
    %414 = vmatprep.subr.mxu0 0.0
    %415 = vmatpush2.msra.mxu0 0.0
    %416 = vmatprep.subr.mxu0 0.0
    %417 = vmatpush2.msra.mxu0 0.0
    %418 = vmatprep.mubr.f32.mxu0 0.0
    %419 = vmatmul.mubr.f32.gmra.mxu0 %v352
    %v420 = vpop.f32.mrf.mxu0
    %v421 = vadd.f32 0.0, %v420
    %v422 = vpop.f32.mrf.mxu0
    %423 = vdwg.mxu0
    %v425 = vsel %vm350, %v333, 0
    %427 = vmatprep.subr.mxu0 0.0
    %428 = vmatpush1.msra.mxu0 0.0
    %429 = vmatprep.subr.mxu0 0.0
    %430 = vmatpush1.msra.mxu0 0.0
    %431 = vmatprep.subr.mxu0 0.0
    %432 = vmatpush1.msra.mxu0 0.0
    %433 = vmatprep.subr.mxu0 0.0
    %434 = vmatpush1.msra.mxu0 0.0
    %435 = vmatprep.subr.mxu0 0.0
    %436 = vmatpush1.msra.mxu0 0.0
    %437 = vmatprep.subr.mxu0 0.0
    %438 = vmatpush1.msra.mxu0 0.0
    %439 = vmatprep.subr.mxu0 0.0
    %440 = vmatpush1.msra.mxu0 0.0
    %441 = vmatprep.subr.mxu0 0.0
    %442 = vmatpush1.msra.mxu0 0.0
    %443 = vmatprep.subr.mxu0 0.0
    %444 = vmatpush1.msra.mxu0 0.0
    %445 = vmatprep.subr.mxu0 0.0
    %446 = vmatpush1.msra.mxu0 0.0
    %447 = vmatprep.subr.mxu0 0.0
    %448 = vmatpush1.msra.mxu0 0.0
    %449 = vmatprep.subr.mxu0 0.0
    %450 = vmatpush1.msra.mxu0 0.0
    %451 = vmatprep.subr.mxu0 0.0
    %452 = vmatpush1.msra.mxu0 0.0
    %453 = vmatprep.subr.mxu0 0.0
    %454 = vmatpush1.msra.mxu0 0.0
    %455 = vmatprep.subr.mxu0 0.0
    %456 = vmatpush1.msra.mxu0 0.0
    %457 = vmatprep.subr.mxu0 0.0
    %458 = vmatpush1.msra.mxu0 %v346
    %459 = vmatprep.subr.mxu0 0.0
    %460 = vmatpush2.msra.mxu0 0.0
    %461 = vmatprep.subr.mxu0 0.0
    %462 = vmatpush2.msra.mxu0 0.0
    %463 = vmatprep.subr.mxu0 0.0
    %464 = vmatpush2.msra.mxu0 0.0
    %465 = vmatprep.subr.mxu0 0.0
    %466 = vmatpush2.msra.mxu0 0.0
    %467 = vmatprep.subr.mxu0 0.0
    %468 = vmatpush2.msra.mxu0 0.0
    %469 = vmatprep.subr.mxu0 0.0
    %470 = vmatpush2.msra.mxu0 0.0
    %471 = vmatprep.subr.mxu0 0.0
    %472 = vmatpush2.msra.mxu0 0.0
    %473 = vmatprep.subr.mxu0 0.0
    %474 = vmatpush2.msra.mxu0 0.0
    %475 = vmatprep.subr.mxu0 0.0
    %476 = vmatpush2.msra.mxu0 0.0
    %477 = vmatprep.subr.mxu0 0.0
    %478 = vmatpush2.msra.mxu0 0.0
    %479 = vmatprep.subr.mxu0 0.0
    %480 = vmatpush2.msra.mxu0 0.0
    %481 = vmatprep.subr.mxu0 0.0
    %482 = vmatpush2.msra.mxu0 0.0
    %483 = vmatprep.subr.mxu0 0.0
    %484 = vmatpush2.msra.mxu0 0.0
    %485 = vmatprep.subr.mxu0 0.0
    %486 = vmatpush2.msra.mxu0 0.0
    %487 = vmatprep.subr.mxu0 0.0
    %488 = vmatpush2.msra.mxu0 0.0
    %489 = vmatprep.subr.mxu0 0.0
    %490 = vmatpush2.msra.mxu0 0.0
    %491 = vmatprep.mubr.f32.mxu0 0.0
    %492 = vmatmul.mubr.f32.gmra.mxu0 %v425
    %v493 = vpop.f32.mrf.mxu0
    %v494 = vadd.f32 %v421, %v493
    %v495 = vpop.f32.mrf.mxu0
    %496 = vdwg.mxu0
    %s497 = scalar_lea.vmem %s3, 16
    %v498 = vld [vmem:[%s497] sm:$0xff]
    %499 = vrot.lane.b32.xlu0 %v332, 126
    %v500 = vpop.permute.xlu0 %499
    %v501 = vadd.s32 %v24, 2
    %vm502 = vcmp.ge.s32.totalorder %v501, 0
    %vm503 = vcmp.lt.s32.totalorder %v501, 8
    %vm504 = vmand %vm502, %vm503
    %v505 = vsel %vm504, 1, 0
    %v506 = vlaneseq
    %v507 = vshrl.u32 %v506, 7
    %v508 = vsub.s32 0, %v507
    %v509 = vrot.slane %v505, %v508
    %vm510 = vcmp.eq.s32.totalorder %v509, 1
    %v511 = vsel %vm510, %v500, 0.0
    %v513 = vsel %vm350, %v498, 0
    %515 = vmatprep.subr.mxu0 0.0
    %516 = vmatpush1.msra.mxu0 0.0
    %517 = vmatprep.subr.mxu0 0.0
    %518 = vmatpush1.msra.mxu0 0.0
    %519 = vmatprep.subr.mxu0 0.0
    %520 = vmatpush1.msra.mxu0 0.0
    %521 = vmatprep.subr.mxu0 0.0
    %522 = vmatpush1.msra.mxu0 0.0
    %523 = vmatprep.subr.mxu0 0.0
    %524 = vmatpush1.msra.mxu0 0.0
    %525 = vmatprep.subr.mxu0 0.0
    %526 = vmatpush1.msra.mxu0 0.0
    %527 = vmatprep.subr.mxu0 0.0
    %528 = vmatpush1.msra.mxu0 0.0
    %529 = vmatprep.subr.mxu0 0.0
    %530 = vmatpush1.msra.mxu0 0.0
    %531 = vmatprep.subr.mxu0 0.0
    %532 = vmatpush1.msra.mxu0 0.0
    %533 = vmatprep.subr.mxu0 0.0
    %534 = vmatpush1.msra.mxu0 0.0
    %535 = vmatprep.subr.mxu0 0.0
    %536 = vmatpush1.msra.mxu0 0.0
    %537 = vmatprep.subr.mxu0 0.0
    %538 = vmatpush1.msra.mxu0 0.0
    %539 = vmatprep.subr.mxu0 0.0
    %540 = vmatpush1.msra.mxu0 0.0
    %541 = vmatprep.subr.mxu0 0.0
    %542 = vmatpush1.msra.mxu0 0.0
    %543 = vmatprep.subr.mxu0 0.0
    %544 = vmatpush1.msra.mxu0 0.0
    %545 = vmatprep.subr.mxu0 0.0
    %546 = vmatpush1.msra.mxu0 %v511
    %547 = vmatprep.subr.mxu0 0.0
    %548 = vmatpush2.msra.mxu0 0.0
    %549 = vmatprep.subr.mxu0 0.0
    %550 = vmatpush2.msra.mxu0 0.0
    %551 = vmatprep.subr.mxu0 0.0
    %552 = vmatpush2.msra.mxu0 0.0
    %553 = vmatprep.subr.mxu0 0.0
    %554 = vmatpush2.msra.mxu0 0.0
    %555 = vmatprep.subr.mxu0 0.0
    %556 = vmatpush2.msra.mxu0 0.0
    %557 = vmatprep.subr.mxu0 0.0
    %558 = vmatpush2.msra.mxu0 0.0
    %559 = vmatprep.subr.mxu0 0.0
    %560 = vmatpush2.msra.mxu0 0.0
    %561 = vmatprep.subr.mxu0 0.0
    %562 = vmatpush2.msra.mxu0 0.0
    %563 = vmatprep.subr.mxu0 0.0
    %564 = vmatpush2.msra.mxu0 0.0
    %565 = vmatprep.subr.mxu0 0.0
    %566 = vmatpush2.msra.mxu0 0.0
    %567 = vmatprep.subr.mxu0 0.0
    %568 = vmatpush2.msra.mxu0 0.0
    %569 = vmatprep.subr.mxu0 0.0
    %570 = vmatpush2.msra.mxu0 0.0
    %571 = vmatprep.subr.mxu0 0.0
    %572 = vmatpush2.msra.mxu0 0.0
    %573 = vmatprep.subr.mxu0 0.0
    %574 = vmatpush2.msra.mxu0 0.0
    %575 = vmatprep.subr.mxu0 0.0
    %576 = vmatpush2.msra.mxu0 0.0
    %577 = vmatprep.subr.mxu0 0.0
    %578 = vmatpush2.msra.mxu0 0.0
    %579 = vmatprep.mubr.f32.mxu0 0.0
    %580 = vmatmul.mubr.f32.gmra.mxu0 %v513
    %v581 = vpop.f32.mrf.mxu0
    %v582 = vadd.f32 0.0, %v581
    %v583 = vpop.f32.mrf.mxu0
    %584 = vdwg.mxu0
    %v585 = vadd.f32 %v494, %v582
    %586 = vadd.xlane.f32.xlu0 %v585
    %v587 = vpop.xlane.xlu0 %586
    %v588 = vmul.f32 %v587, 0.0625
    %v589 = vsub.f32 %v585, %v588
    %v590 = vmul.f32 %v589, %v589
    %591 = vadd.xlane.f32.xlu0 %v590
    %v592 = vpop.xlane.xlu0 %591
    %v593 = vmul.f32 %v588, %v588
    %v594 = vmul.f32 %v593, 112.0
    %v595 = vsub.f32 %v592, %v594
    %v596 = vmul.f32 %v595, 0.0625
    %v597 = vmax.f32 %v596, 0.0
    %v598 = vadd.f32 %v597, 1e-05
    %v599 = vrsqrt.pop %v598
    %v600 = vmul.f32 %v25, %v599
    %v601 = vmul.f32 %v588, %v600
    %603 = vrot.lane.b32.xlu0 %v601, 1
    %v604 = vpop.permute.xlu0 %603
    %v606 = vsub.f32 %v25, %v604
    %608 = vset.pattern.permute.xlu0 2
    %609 = vperm.xlu0 %608, %v600
    %v610 = vpop.permute.xlu0 %609
    %v612 = vmul.f32 %v585, %v610
    %614 = vset.pattern.permute.xlu0 3
    %615 = vperm.xlu0 %614, %v606
    %v616 = vpop.permute.xlu0 %615
    %v618 = vadd.f32 %v612, %v616
    %v619 = vld [vmem:[%s5] sm:$0xff]
    %v621 = vsel %vm53, %v619, 0
    %v624 = vsel %vm57, %v26, 0
    %626 = vmatprep.subr.mxu0 0.0
    %627 = vmatpush1.msra.mxu0 0.0
    %628 = vmatprep.subr.mxu0 0.0
    %629 = vmatpush1.msra.mxu0 0.0
    %630 = vmatprep.subr.mxu0 0.0
    %631 = vmatpush1.msra.mxu0 0.0
    %632 = vmatprep.subr.mxu0 0.0
    %633 = vmatpush1.msra.mxu0 0.0
    %634 = vmatprep.subr.mxu0 0.0
    %635 = vmatpush1.msra.mxu0 0.0
    %636 = vmatprep.subr.mxu0 0.0
    %637 = vmatpush1.msra.mxu0 0.0
    %638 = vmatprep.subr.mxu0 0.0
    %639 = vmatpush1.msra.mxu0 0.0
    %640 = vmatprep.subr.mxu0 0.0
    %641 = vmatpush1.msra.mxu0 0.0
    %642 = vmatprep.subr.mxu0 0.0
    %643 = vmatpush1.msra.mxu0 0.0
    %644 = vmatprep.subr.mxu0 0.0
    %645 = vmatpush1.msra.mxu0 0.0
    %646 = vmatprep.subr.mxu0 0.0
    %647 = vmatpush1.msra.mxu0 0.0
    %648 = vmatprep.subr.mxu0 0.0
    %649 = vmatpush1.msra.mxu0 0.0
    %650 = vmatprep.subr.mxu0 0.0
    %651 = vmatpush1.msra.mxu0 0.0
    %652 = vmatprep.subr.mxu0 0.0
    %653 = vmatpush1.msra.mxu0 0.0
    %654 = vmatprep.subr.mxu0 0.0
    %655 = vmatpush1.msra.mxu0 0.0
    %656 = vmatprep.subr.mxu0 0.0
    %657 = vmatpush1.msra.mxu0 %v624
    %658 = vmatprep.subr.mxu0 0.0
    %659 = vmatpush2.msra.mxu0 0.0
    %660 = vmatprep.subr.mxu0 0.0
    %661 = vmatpush2.msra.mxu0 0.0
    %662 = vmatprep.subr.mxu0 0.0
    %663 = vmatpush2.msra.mxu0 0.0
    %664 = vmatprep.subr.mxu0 0.0
    %665 = vmatpush2.msra.mxu0 0.0
    %666 = vmatprep.subr.mxu0 0.0
    %667 = vmatpush2.msra.mxu0 0.0
    %668 = vmatprep.subr.mxu0 0.0
    %669 = vmatpush2.msra.mxu0 0.0
    %670 = vmatprep.subr.mxu0 0.0
    %671 = vmatpush2.msra.mxu0 0.0
    %672 = vmatprep.subr.mxu0 0.0
    %673 = vmatpush2.msra.mxu0 0.0
    %674 = vmatprep.subr.mxu0 0.0
    %675 = vmatpush2.msra.mxu0 0.0
    %676 = vmatprep.subr.mxu0 0.0
    %677 = vmatpush2.msra.mxu0 0.0
    %678 = vmatprep.subr.mxu0 0.0
    %679 = vmatpush2.msra.mxu0 0.0
    %680 = vmatprep.subr.mxu0 0.0
    %681 = vmatpush2.msra.mxu0 0.0
    %682 = vmatprep.subr.mxu0 0.0
    %683 = vmatpush2.msra.mxu0 0.0
    %684 = vmatprep.subr.mxu0 0.0
    %685 = vmatpush2.msra.mxu0 0.0
    %686 = vmatprep.subr.mxu0 0.0
    %687 = vmatpush2.msra.mxu0 0.0
    %688 = vmatprep.subr.mxu0 0.0
    %689 = vmatpush2.msra.mxu0 0.0
    %690 = vmatprep.mubr.f32.mxu0 0.0
    %691 = vmatmul.mubr.f32.gmra.mxu0 %v621
    %v692 = vpop.f32.mrf.mxu0
    %v693 = vadd.f32 0.0, %v692
    %v694 = vpop.f32.mrf.mxu0
    %695 = vdwg.mxu0
    %696 = vadd.xlane.f32.xlu0 %v693
    %v697 = vpop.xlane.xlu0 %696
    %v698 = vmul.f32 %v697, 0.0625
    %v699 = vsub.f32 %v693, %v698
    %v700 = vmul.f32 %v699, %v699
    %701 = vadd.xlane.f32.xlu0 %v700
    %v702 = vpop.xlane.xlu0 %701
    %v703 = vmul.f32 %v698, %v698
    %v704 = vmul.f32 %v703, 112.0
    %v705 = vsub.f32 %v702, %v704
    %v706 = vmul.f32 %v705, 0.0625
    %v707 = vmax.f32 %v706, 0.0
    %v708 = vadd.f32 %v707, 1e-05
    %v709 = vrsqrt.pop %v708
    %v710 = vmul.f32 %v25, %v709
    %v711 = vmul.f32 %v698, %v710
    %713 = vrot.lane.b32.xlu0 %v711, 1
    %v714 = vpop.permute.xlu0 %713
    %v716 = vsub.f32 %v25, %v714
    %718 = vset.pattern.permute.xlu0 4
    %719 = vperm.xlu0 %718, %v710
    %v720 = vpop.permute.xlu0 %719
    %v722 = vmul.f32 %v693, %v720
    %724 = vset.pattern.permute.xlu0 5
    %725 = vperm.xlu0 %724, %v716
    %v726 = vpop.permute.xlu0 %725
    %v728 = vadd.f32 %v722, %v726
    %v729 = vadd.f32 %v618, %v728
    %v730 = vmax.f32 %v729, 0.0
    %731 = vst [vmem:[#allocation2] sm:$0xff] %v730
    // Predicated region
    $region26: #{tpu_custom_call.1} parent=1 // pred_check
      _
    $region27: #{tpu_custom_call.1} parent=1 // pred_check_branch
      %733 = sbr.rel (0) target = $region29
    $region28: #{tpu_custom_call.1} parent=1 // pred_region
      %s735 = ssub.s32 128, 128
      %736 = vsyncadd [#allocation3], %s735
      %s738 = sshll.u32 [#allocation2], 4
      %s739 = int_to_ptr.vmem [resolvable:$true] %s738
      %741 = dma.vmem_to_hbm [thread:$0]  %s739, 128, %s6, [#allocation3]
    $region29: #{tpu_custom_call.1} parent=1 // pred_fallthru
      _
    // Predicated region
    $region30: #{tpu_custom_call.1} parent=1 // pred_check
      _
    $region31: #{tpu_custom_call.1} parent=1 // pred_check_branch
      %743 = sbr.rel (0) target = $region33
    $region32: #{tpu_custom_call.1} parent=1 // pred_region
      %744 = dma.done [#allocation3], 128
    $region33: #{tpu_custom_call.1} parent=1 // pred_fallthru
      _
    %745 = vsyncpa [#allocation3], 1

</llo_original>
